<compile_context>
chip_gen: v6e
topology: v6e:2x2x1
jax: 0.10.0
libtpu: 0.0.40
codegen_flags: <defaults>
</compile_context>

<pallas_src>
import jax
import jax.numpy as jnp
from jax.experimental import pallas as pl
from jax.experimental.pallas import tpu as pltpu


def mlp_kernel(x_ref, w1_ref, b1_ref, w2_ref, b2_ref, w3_ref, b3_ref, wo_ref, o_ref):
    # x_ref: (2, tile_n)   activations with batch on lanes
    x = x_ref[...]
    w1 = w1_ref[...]                                     # (H, 2)

    # Layer 1 (K=2): two VPU broadcast FMAs instead of a degenerate MXU matmul.
    h = jnp.tanh(w1[:, 0:1] * x[0:1, :] + w1[:, 1:2] * x[1:2, :] + b1_ref[...])   # (H, tile_n)

    # Layers 2 & 3: dense MXU matmuls, output lanes = tile_n (lane-dense).
    h = jnp.tanh(jnp.dot(w2_ref[...], h, preferred_element_type=jnp.float32) + b2_ref[...])  # (H, tile_n)
    h = jnp.tanh(jnp.dot(w3_ref[...], h, preferred_element_type=jnp.float32) + b3_ref[...])  # (S, tile_n)

    # Output Linear(S, 1, bias=False): weighted sum over features (sublane reduction on XLU),
    # avoids an N=1 MXU matmul and stays correct for any (trainable) wo.
    o_ref[...] = jnp.sum(wo_ref[...] * h, axis=0, keepdims=True)                  # (1, tile_n)


def net_forward(xy, params, *, tile_n=512):
    """xy: (N, 2) float32. Returns (N, 1) float32."""
    w1, b1, w2, b2, w3, b3, wo = params
    N, fin = xy.shape
    assert fin == 2
    tile = min(tile_n, N)
    assert N % tile == 0, "batch must be a multiple of the tile size"

    x_t = xy.T  # (2, N) — layout plumbing in the wrapper, not compute

    # Full (untiled) specs for the small weight/bias operands; constant (0,0) block
    # index keeps them resident across grid steps (no re-DMA per iteration).
    def full_spec(arr):
        return pl.BlockSpec(arr.shape, lambda i: (0,) * arr.ndim)

    grid = (N // tile,)
    out = pl.pallas_call(
        mlp_kernel,
        out_shape=jax.ShapeDtypeStruct((1, N), jnp.float32),
        grid_spec=pltpu.PrefetchScalarGridSpec(
            num_scalar_prefetch=0,
            grid=grid,
            in_specs=[
                pl.BlockSpec((2, tile), lambda i: (0, i)),   # x tile: batch on lanes
                full_spec(w1), full_spec(b1),
                full_spec(w2), full_spec(b2),
                full_spec(w3), full_spec(b3),
                full_spec(wo),
            ],
            out_specs=pl.BlockSpec((1, tile), lambda i: (0, i)),  # lane-dense output slab
        ),
        compiler_params=pltpu.CompilerParams(
            dimension_semantics=("parallel",)  # lets v7x shard the batch axis when grid >= 2
        ),
    )(x_t, w1, b1, w2, b2, w3, b3, wo)
    return out.reshape(N, 1)


def init_params(key, hidden_size=32, subspace_dim=32):
    """Mimics PyTorch nn.Linear default init (U[-1/sqrt(fan_in), 1/sqrt(fan_in)]).
    Weights stored as (out, in); biases as (out, 1) for the transposed dataflow."""
    ks = jax.random.split(key, 6)

    def linear(kw, kb, fan_in, fan_out):
        bound = 1.0 / jnp.sqrt(fan_in)
        w = jax.random.uniform(kw, (fan_out, fan_in), jnp.float32, -bound, bound)
        b = jax.random.uniform(kb, (fan_out, 1), jnp.float32, -bound, bound)
        return w, b

    w1, b1 = linear(ks[0], ks[1], 2, hidden_size)
    w2, b2 = linear(ks[2], ks[3], hidden_size, hidden_size)
    w3, b3 = linear(ks[4], ks[5], hidden_size, subspace_dim)
    # self.output: Linear(subspace_dim, 1, bias=False) with weight filled to 1.0 (trainable)
    wo = jnp.ones((subspace_dim, 1), jnp.float32)
    return (w1, b1, w2, b2, w3, b3, wo)


def net_forward_ref(xy, params):
    w1, b1, w2, b2, w3, b3, wo = params
    h = jnp.tanh(xy @ w1.T + b1.T)
    h = jnp.tanh(h @ w2.T + b2.T)
    h = jnp.tanh(h @ w3.T + b3.T)
    return h @ wo


if __name__ == "__main__":
    key = jax.random.PRNGKey(0)
    k_params, k_x = jax.random.split(key)

    hidden_size = 32
    subspace_dim = 32
    N = 256          # batch of (x, y) collocation points -> single grid step (tile = 256)

    params = init_params(k_params, hidden_size, subspace_dim)
    xy = jax.random.uniform(k_x, (N, 2), jnp.float32)   # input points in [0, 1]^2

    out = net_forward(xy, params)
    out = jax.block_until_ready(out)

    ref = net_forward_ref(xy, params)
    assert out.shape == (N, 1)
    assert jnp.allclose(out, ref, atol=1e-5, rtol=1e-5), "mismatch vs reference"

    print("KERNEL_OK")
</pallas_src>

<mosaic_0001>
module attributes {stable_mosaic.version = 11 : i64} {
  func.func @mlp_kernel(%arg0: i32, %arg1: memref<2x256xf32, #tpu.memory_space<vmem>>, %arg2: memref<32x2xf32, #tpu.memory_space<vmem>>, %arg3: memref<32x1xf32, #tpu.memory_space<vmem>>, %arg4: memref<32x32xf32, #tpu.memory_space<vmem>>, %arg5: memref<32x1xf32, #tpu.memory_space<vmem>>, %arg6: memref<32x32xf32, #tpu.memory_space<vmem>>, %arg7: memref<32x1xf32, #tpu.memory_space<vmem>>, %arg8: memref<32x1xf32, #tpu.memory_space<vmem>>, %arg9: memref<1x256xf32, #tpu.memory_space<vmem>>) attributes {dimension_semantics = [#tpu.dimension_semantics<parallel>], iteration_bounds = array<i64: 1>, scalar_prefetch = 0 : i64, scratch_operands = 0 : i64, tpu.core_type = #tpu.core_type<tc>, window_params = [{transform_indices = @transform_0, window_bounds = array<i64: 2, 256>}, {pipeline_mode = #tpu.pipeline_mode<synchronous>, transform_indices = @transform_1, window_bounds = array<i64: 32, 2>}, {pipeline_mode = #tpu.pipeline_mode<synchronous>, transform_indices = @transform_2, window_bounds = array<i64: 32, 1>}, {pipeline_mode = #tpu.pipeline_mode<synchronous>, transform_indices = @transform_3, window_bounds = array<i64: 32, 32>}, {pipeline_mode = #tpu.pipeline_mode<synchronous>, transform_indices = @transform_4, window_bounds = array<i64: 32, 1>}, {pipeline_mode = #tpu.pipeline_mode<synchronous>, transform_indices = @transform_5, window_bounds = array<i64: 32, 32>}, {pipeline_mode = #tpu.pipeline_mode<synchronous>, transform_indices = @transform_6, window_bounds = array<i64: 32, 1>}, {pipeline_mode = #tpu.pipeline_mode<synchronous>, transform_indices = @transform_7, window_bounds = array<i64: 32, 1>}, {transform_indices = @transform_8, window_bounds = array<i64: 1, 256>}]} {
    %c0 = arith.constant 0 : index
    %c0_0 = arith.constant 0 : index
    %0 = vector.load %arg1[%c0, %c0_0] : memref<2x256xf32, #tpu.memory_space<vmem>>, vector<2x256xf32>
    %c0_1 = arith.constant 0 : index
    %c0_2 = arith.constant 0 : index
    %1 = vector.load %arg2[%c0_1, %c0_2] : memref<32x2xf32, #tpu.memory_space<vmem>>, vector<32x2xf32>
    %2 = vector.extract_strided_slice %1 {offsets = [0, 0], sizes = [32, 1], strides = [1, 1]} : vector<32x2xf32> to vector<32x1xf32>
    %3 = vector.extract_strided_slice %0 {offsets = [0, 0], sizes = [1, 256], strides = [1, 1]} : vector<2x256xf32> to vector<1x256xf32>
    %4 = vector.broadcast %2 : vector<32x1xf32> to vector<32x256xf32>
    %5 = vector.broadcast %3 : vector<1x256xf32> to vector<32x256xf32>
    %6 = arith.mulf %4, %5 : vector<32x256xf32>
    %7 = vector.extract_strided_slice %1 {offsets = [0, 1], sizes = [32, 1], strides = [1, 1]} : vector<32x2xf32> to vector<32x1xf32>
    %8 = vector.extract_strided_slice %0 {offsets = [1, 0], sizes = [1, 256], strides = [1, 1]} : vector<2x256xf32> to vector<1x256xf32>
    %9 = vector.broadcast %7 : vector<32x1xf32> to vector<32x256xf32>
    %10 = vector.broadcast %8 : vector<1x256xf32> to vector<32x256xf32>
    %11 = arith.mulf %9, %10 : vector<32x256xf32>
    %12 = arith.addf %6, %11 : vector<32x256xf32>
    %c0_3 = arith.constant 0 : index
    %c0_4 = arith.constant 0 : index
    %13 = vector.load %arg3[%c0_3, %c0_4] : memref<32x1xf32, #tpu.memory_space<vmem>>, vector<32x1xf32>
    %14 = vector.broadcast %13 : vector<32x1xf32> to vector<32x256xf32>
    %15 = arith.addf %12, %14 : vector<32x256xf32>
    %16 = math.tanh %15 : vector<32x256xf32>
    %c0_5 = arith.constant 0 : index
    %c0_6 = arith.constant 0 : index
    %17 = vector.load %arg4[%c0_5, %c0_6] : memref<32x32xf32, #tpu.memory_space<vmem>>, vector<32x32xf32>
    %cst = arith.constant dense<0.000000e+00> : vector<32x256xf32>
    %18 = tpu.matmul %17, %16, %cst {dimension_numbers = #tpu.dot_dimension_numbers<[1], [0], [0], [1], [0, 0, 1, 1], [], []>} : vector<32x32xf32>, vector<32x256xf32>, vector<32x256xf32> -> vector<32x256xf32>
    %c0_7 = arith.constant 0 : index
    %c0_8 = arith.constant 0 : index
    %19 = vector.load %arg5[%c0_7, %c0_8] : memref<32x1xf32, #tpu.memory_space<vmem>>, vector<32x1xf32>
    %20 = vector.broadcast %19 : vector<32x1xf32> to vector<32x256xf32>
    %21 = arith.addf %18, %20 : vector<32x256xf32>
    %22 = math.tanh %21 : vector<32x256xf32>
    %c0_9 = arith.constant 0 : index
    %c0_10 = arith.constant 0 : index
    %23 = vector.load %arg6[%c0_9, %c0_10] : memref<32x32xf32, #tpu.memory_space<vmem>>, vector<32x32xf32>
    %cst_11 = arith.constant dense<0.000000e+00> : vector<32x256xf32>
    %24 = tpu.matmul %23, %22, %cst_11 {dimension_numbers = #tpu.dot_dimension_numbers<[1], [0], [0], [1], [0, 0, 1, 1], [], []>} : vector<32x32xf32>, vector<32x256xf32>, vector<32x256xf32> -> vector<32x256xf32>
    %c0_12 = arith.constant 0 : index
    %c0_13 = arith.constant 0 : index
    %25 = vector.load %arg7[%c0_12, %c0_13] : memref<32x1xf32, #tpu.memory_space<vmem>>, vector<32x1xf32>
    %26 = vector.broadcast %25 : vector<32x1xf32> to vector<32x256xf32>
    %27 = arith.addf %24, %26 : vector<32x256xf32>
    %28 = math.tanh %27 : vector<32x256xf32>
    %c0_14 = arith.constant 0 : index
    %c0_15 = arith.constant 0 : index
    %29 = vector.load %arg8[%c0_14, %c0_15] : memref<32x1xf32, #tpu.memory_space<vmem>>, vector<32x1xf32>
    %30 = vector.broadcast %29 : vector<32x1xf32> to vector<32x256xf32>
    %31 = arith.mulf %30, %28 : vector<32x256xf32>
    %cst_16 = arith.constant dense<0.000000e+00> : vector<256xf32>
    %32 = vector.multi_reduction <add>, %31, %cst_16 [0] : vector<32x256xf32> to vector<256xf32>
    %33 = vector.shape_cast %32 : vector<256xf32> to vector<1x256xf32>
    %c0_17 = arith.constant 0 : index
    %c0_18 = arith.constant 0 : index
    %34 = vector.load %arg9[%c0_17, %c0_18] : memref<1x256xf32, #tpu.memory_space<vmem>>, vector<1x256xf32>
    tpu.vector_store %arg9[%c0_17, %c0_18], %33 {strides = array<i32>} : memref<1x256xf32, #tpu.memory_space<vmem>>, vector<1x256xf32>,
    return
  }
  func.func @transform_0(%arg0: i32) -> (i32, i32) {
    %c0_i32 = arith.constant 0 : i32
    %c0_i32_0 = arith.constant 0 : i32
    return %c0_i32, %arg0 : i32, i32
  }
  func.func @transform_1(%arg0: i32) -> (i32, i32) {
    %c0_i32 = arith.constant 0 : i32
    %c0_i32_0 = arith.constant 0 : i32
    %c0_i32_1 = arith.constant 0 : i32
    return %c0_i32, %c0_i32_0 : i32, i32
  }
  func.func @transform_2(%arg0: i32) -> (i32, i32) {
    %c0_i32 = arith.constant 0 : i32
    %c0_i32_0 = arith.constant 0 : i32
    %c0_i32_1 = arith.constant 0 : i32
    return %c0_i32, %c0_i32_0 : i32, i32
  }
  func.func @transform_3(%arg0: i32) -> (i32, i32) {
    %c0_i32 = arith.constant 0 : i32
    %c0_i32_0 = arith.constant 0 : i32
    %c0_i32_1 = arith.constant 0 : i32
    return %c0_i32, %c0_i32_0 : i32, i32
  }
  func.func @transform_4(%arg0: i32) -> (i32, i32) {
    %c0_i32 = arith.constant 0 : i32
    %c0_i32_0 = arith.constant 0 : i32
    %c0_i32_1 = arith.constant 0 : i32
    return %c0_i32, %c0_i32_0 : i32, i32
  }
  func.func @transform_5(%arg0: i32) -> (i32, i32) {
    %c0_i32 = arith.constant 0 : i32
    %c0_i32_0 = arith.constant 0 : i32
    %c0_i32_1 = arith.constant 0 : i32
    return %c0_i32, %c0_i32_0 : i32, i32
  }
  func.func @transform_6(%arg0: i32) -> (i32, i32) {
    %c0_i32 = arith.constant 0 : i32
    %c0_i32_0 = arith.constant 0 : i32
    %c0_i32_1 = arith.constant 0 : i32
    return %c0_i32, %c0_i32_0 : i32, i32
  }
  func.func @transform_7(%arg0: i32) -> (i32, i32) {
    %c0_i32 = arith.constant 0 : i32
    %c0_i32_0 = arith.constant 0 : i32
    %c0_i32_1 = arith.constant 0 : i32
    return %c0_i32, %c0_i32_0 : i32, i32
  }
  func.func @transform_8(%arg0: i32) -> (i32, i32) {
    %c0_i32 = arith.constant 0 : i32
    %c0_i32_0 = arith.constant 0 : i32
    return %c0_i32, %arg0 : i32, i32
  }
}

</mosaic_0001>

<llo_original>
// kernel: tpu_custom_call.1
$region0: #{tpu_custom_call.1}
  #allocation0 [shape = 'u32[]', space=smem, size = 0x4, offset = 0x4, fixed_abs, tag = 'smem constant byte address 0x4 - core index']
  #allocation1 [shape = 'u32[144,128]{1,0:T(1,128)}', space=vmem, size = 0x12000, scoped, tag = 'internal scratch']
  %s0 = inlined_call_operand.vmem [shape: f32[2,256], index: 0, kind: input, shape index: {}]
  %s1 = inlined_call_operand.vmem [shape: f32[32,2], index: 1, kind: input, shape index: {}]
  %s2 = inlined_call_operand.vmem [shape: f32[32,1], index: 2, kind: input, shape index: {}]
  %s3 = inlined_call_operand.vmem [shape: f32[32,32], index: 3, kind: input, shape index: {}]
  %s4 = inlined_call_operand.vmem [shape: f32[32,1], index: 4, kind: input, shape index: {}]
  %s5 = inlined_call_operand.vmem [shape: f32[32,32], index: 5, kind: input, shape index: {}]
  %s6 = inlined_call_operand.vmem [shape: f32[32,1], index: 6, kind: input, shape index: {}]
  %s7 = inlined_call_operand.vmem [shape: f32[32,1], index: 7, kind: input, shape index: {}]
  %s8 = inlined_call_operand.hbm [shape: f32[1,256], index: 8, kind: output, shape index: {}]
  %s9 = sld [smem:[#allocation0]]
  $region42: #{tpu_custom_call.1} parent=0
    _
  %s11 = ssub.s32 1, %s9
  %s12 = scalar_select 0, %s11, %s9
  $region1: #{tpu_custom_call.1} parent=0
    #allocation2 [shape = 'u8[1024]{0}', space=vmem, size = 0x400, scoped, tag = 'output window, operand 0, single buffered']
    #allocation3 [shape = 's32[1]{0}', space=sflag, size = 0x4, scoped, tag = 'scoped memory for tpu_custom_call.1']
    %13 = vsyncpa [#allocation3], 0
    // Predicated region
    $region2: #{tpu_custom_call.1} parent=1 // pred_check
      _
    $region3: #{tpu_custom_call.1} parent=1 // pred_check_branch
      %15 = sbr.rel (0) target = $region5
    $region4: #{tpu_custom_call.1} parent=1 // pred_region
      _
    $region5: #{tpu_custom_call.1} parent=1 // pred_fallthru
      _
    // Predicated region
    $region6: #{tpu_custom_call.1} parent=1 // pred_check
      _
    $region7: #{tpu_custom_call.1} parent=1 // pred_check_branch
      %17 = sbr.rel (0) target = $region9
    $region8: #{tpu_custom_call.1} parent=1 // pred_region
      _
    $region9: #{tpu_custom_call.1} parent=1 // pred_fallthru
      _
    // Predicated region
    $region10: #{tpu_custom_call.1} parent=1 // pred_check
      _
    $region11: #{tpu_custom_call.1} parent=1 // pred_check_branch
      %19 = sbr.rel (0) target = $region13
    $region12: #{tpu_custom_call.1} parent=1 // pred_region
      _
    $region13: #{tpu_custom_call.1} parent=1 // pred_fallthru
      _
    // Predicated region
    $region14: #{tpu_custom_call.1} parent=1 // pred_check
      _
    $region15: #{tpu_custom_call.1} parent=1 // pred_check_branch
      %21 = sbr.rel (0) target = $region17
    $region16: #{tpu_custom_call.1} parent=1 // pred_region
      _
    $region17: #{tpu_custom_call.1} parent=1 // pred_fallthru
      _
    // Predicated region
    $region18: #{tpu_custom_call.1} parent=1 // pred_check
      _
    $region19: #{tpu_custom_call.1} parent=1 // pred_check_branch
      %23 = sbr.rel (0) target = $region21
    $region20: #{tpu_custom_call.1} parent=1 // pred_region
      _
    $region21: #{tpu_custom_call.1} parent=1 // pred_fallthru
      _
    // Predicated region
    $region22: #{tpu_custom_call.1} parent=1 // pred_check
      _
    $region23: #{tpu_custom_call.1} parent=1 // pred_check_branch
      %25 = sbr.rel (0) target = $region25
    $region24: #{tpu_custom_call.1} parent=1 // pred_region
      _
    $region25: #{tpu_custom_call.1} parent=1 // pred_fallthru
      _
    // Predicated region
    $region26: #{tpu_custom_call.1} parent=1 // pred_check
      _
    $region27: #{tpu_custom_call.1} parent=1 // pred_check_branch
      %27 = sbr.rel (0) target = $region29
    $region28: #{tpu_custom_call.1} parent=1 // pred_region
      _
    $region29: #{tpu_custom_call.1} parent=1 // pred_fallthru
      _
    // Predicated region
    $region30: #{tpu_custom_call.1} parent=1 // pred_check
      _
    $region31: #{tpu_custom_call.1} parent=1 // pred_check_branch
      %29 = sbr.rel (0) target = $region33
    $region32: #{tpu_custom_call.1} parent=1 // pred_region
      _
    $region33: #{tpu_custom_call.1} parent=1 // pred_fallthru
      _
    %v30 = vld [vmem:[%s0] sm:$0xf]
    %v31 = vld [vmem:[%s1] sm:$0xff]
    %v32 = vld [vmem:[%s1 + $0x8] sm:$0xff]
    %v33 = vld [vmem:[%s1 + $0x10] sm:$0xff]
    %v34 = vld [vmem:[%s1 + $0x18] sm:$0xff]
    %36 = vset.pattern.permute.xlu0 0
    %37 = vperm.xlu0 %36, %v31
    %v38 = vpop.permute.xlu0 %37
    %41 = vset.pattern.permute.xlu0 0
    %42 = vperm.xlu0 %41, %v32
    %v43 = vpop.permute.xlu0 %42
    %46 = vset.pattern.permute.xlu0 0
    %47 = vperm.xlu0 %46, %v33
    %v48 = vpop.permute.xlu0 %47
    %51 = vset.pattern.permute.xlu0 0
    %52 = vperm.xlu0 %51, %v34
    %v53 = vpop.permute.xlu0 %52
    %v56 = vlaneseq
    %v57 = vshrl.u32 %v56, 7
    %v58 = vsub.s32 0, %v57
    %v59 = vrot.slane %v30, %v58
    %v60 = vlaneseq
    %v61 = vshrl.u32 %v60, 7
    %v62 = vsub.s32 2, %v61
    %v63 = vrot.slane %v30, %v62
    %v66 = vlaneseq
    %v67 = vshrl.u32 %v66, 7
    %v68 = vsub.s32 0, %v67
    %v69 = vrot.slane %v59, %v68
    %v70 = vlaneseq
    %v71 = vshrl.u32 %v70, 7
    %v72 = vsub.s32 0, %v71
    %v73 = vrot.slane %v63, %v72
    %v74 = vmul.f32 %v38, %v69
    %v75 = vmul.f32 %v38, %v73
    %v76 = vmul.f32 %v43, %v69
    %v77 = vmul.f32 %v43, %v73
    %v78 = vmul.f32 %v48, %v69
    %v79 = vmul.f32 %v48, %v73
    %v80 = vmul.f32 %v53, %v69
    %v81 = vmul.f32 %v53, %v73
    %82 = vset.pattern.permute.xlu0 1
    %83 = vperm.xlu0 %82, %v31
    %v84 = vpop.permute.xlu0 %83
    %86 = vset.pattern.permute.xlu0 1
    %87 = vperm.xlu0 %86, %v32
    %v88 = vpop.permute.xlu0 %87
    %90 = vset.pattern.permute.xlu0 1
    %91 = vperm.xlu0 %90, %v33
    %v92 = vpop.permute.xlu0 %91
    %94 = vset.pattern.permute.xlu0 1
    %95 = vperm.xlu0 %94, %v34
    %v96 = vpop.permute.xlu0 %95
    %v98 = vlaneseq
    %v99 = vshrl.u32 %v98, 7
    %v100 = vsub.s32 1, %v99
    %v101 = vrot.slane %v30, %v100
    %v102 = vlaneseq
    %v103 = vshrl.u32 %v102, 7
    %v104 = vsub.s32 3, %v103
    %v105 = vrot.slane %v30, %v104
    %v108 = vlaneseq
    %v109 = vshrl.u32 %v108, 7
    %v110 = vsub.s32 1, %v109
    %v111 = vrot.slane %v101, %v110
    %v112 = vlaneseq
    %v113 = vshrl.u32 %v112, 7
    %v114 = vsub.s32 1, %v113
    %v115 = vrot.slane %v105, %v114
    %v116 = vmul.f32 %v84, %v111
    %v117 = vmul.f32 %v84, %v115
    %v118 = vmul.f32 %v88, %v111
    %v119 = vmul.f32 %v88, %v115
    %v120 = vmul.f32 %v92, %v111
    %v121 = vmul.f32 %v92, %v115
    %v122 = vmul.f32 %v96, %v111
    %v123 = vmul.f32 %v96, %v115
    %v124 = vadd.f32 %v74, %v116
    %v125 = vadd.f32 %v75, %v117
    %v126 = vadd.f32 %v76, %v118
    %v127 = vadd.f32 %v77, %v119
    %v128 = vadd.f32 %v78, %v120
    %v129 = vadd.f32 %v79, %v121
    %v130 = vadd.f32 %v80, %v122
    %v131 = vadd.f32 %v81, %v123
    %v132 = vld [vmem:[%s2] sm:$0xff]
    %v133 = vld [vmem:[%s2 + $0x8] sm:$0xff]
    %v134 = vld [vmem:[%s2 + $0x10] sm:$0xff]
    %v135 = vld [vmem:[%s2 + $0x18] sm:$0xff]
    %137 = vset.pattern.permute.xlu0 0
    %138 = vperm.xlu0 %137, %v132
    %v139 = vpop.permute.xlu0 %138
    %142 = vset.pattern.permute.xlu0 0
    %143 = vperm.xlu0 %142, %v133
    %v144 = vpop.permute.xlu0 %143
    %147 = vset.pattern.permute.xlu0 0
    %148 = vperm.xlu0 %147, %v134
    %v149 = vpop.permute.xlu0 %148
    %152 = vset.pattern.permute.xlu0 0
    %153 = vperm.xlu0 %152, %v135
    %v154 = vpop.permute.xlu0 %153
    %v156 = vadd.f32 %v124, %v139
    %v157 = vadd.f32 %v125, %v139
    %v158 = vadd.f32 %v126, %v144
    %v159 = vadd.f32 %v127, %v144
    %v160 = vadd.f32 %v128, %v149
    %v161 = vadd.f32 %v129, %v149
    %v162 = vadd.f32 %v130, %v154
    %v163 = vadd.f32 %v131, %v154
    %v164 = vtanh.pop %v156
    %v165 = vtanh.pop %v157
    %v166 = vtanh.pop %v158
    %v167 = vtanh.pop %v159
    %v168 = vtanh.pop %v160
    %v169 = vtanh.pop %v161
    %v170 = vtanh.pop %v162
    %v171 = vtanh.pop %v163
    %v172 = vld [vmem:[%s3] sm:$0xff]
    %v173 = vld [vmem:[%s3 + $0x8] sm:$0xff]
    %v174 = vld [vmem:[%s3 + $0x10] sm:$0xff]
    %v175 = vld [vmem:[%s3 + $0x18] sm:$0xff]
    %v176 = vld [vmem:[%s4] sm:$0xff]
    %v177 = vld [vmem:[%s4 + $0x8] sm:$0xff]
    %v178 = vld [vmem:[%s4 + $0x10] sm:$0xff]
    %v179 = vld [vmem:[%s4 + $0x18] sm:$0xff]
    %181 = vset.pattern.permute.xlu0 0
    %182 = vperm.xlu0 %181, %v176
    %v183 = vpop.permute.xlu0 %182
    %186 = vset.pattern.permute.xlu0 0
    %187 = vperm.xlu0 %186, %v177
    %v188 = vpop.permute.xlu0 %187
    %191 = vset.pattern.permute.xlu0 0
    %192 = vperm.xlu0 %191, %v178
    %v193 = vpop.permute.xlu0 %192
    %196 = vset.pattern.permute.xlu0 0
    %197 = vperm.xlu0 %196, %v179
    %v198 = vpop.permute.xlu0 %197
    %vm200 = vcmask 261120
    %v202 = vsel %vm200, %v172, 0
    %v205 = vsel %vm200, %v173, 0
    %v208 = vsel %vm200, %v174, 0
    %v211 = vsel %vm200, %v175, 0
    %213 = vmatprep.subr.mxu0 0.0
    %214 = vmatpush1.msra.mxu0 0.0
    %215 = vmatprep.subr.mxu0 0.0
    %216 = vmatpush1.msra.mxu0 0.0
    %217 = vmatprep.subr.mxu0 0.0
    %218 = vmatpush1.msra.mxu0 0.0
    %219 = vmatprep.subr.mxu0 0.0
    %220 = vmatpush1.msra.mxu0 0.0
    %221 = vmatprep.subr.mxu0 0.0
    %222 = vmatpush1.msra.mxu0 0.0
    %223 = vmatprep.subr.mxu0 0.0
    %224 = vmatpush1.msra.mxu0 0.0
    %225 = vmatprep.subr.mxu0 0.0
    %226 = vmatpush1.msra.mxu0 0.0
    %227 = vmatprep.subr.mxu0 0.0
    %228 = vmatpush1.msra.mxu0 0.0
    %229 = vmatprep.subr.mxu0 0.0
    %230 = vmatpush1.msra.mxu0 0.0
    %231 = vmatprep.subr.mxu0 0.0
    %232 = vmatpush1.msra.mxu0 0.0
    %233 = vmatprep.subr.mxu0 0.0
    %234 = vmatpush1.msra.mxu0 0.0
    %235 = vmatprep.subr.mxu0 0.0
    %236 = vmatpush1.msra.mxu0 0.0
    %237 = vmatprep.subr.mxu0 %v171
    %238 = vmatpush1.msra.mxu0 %v170
    %239 = vmatprep.subr.mxu0 %v169
    %240 = vmatpush1.msra.mxu0 %v168
    %241 = vmatprep.subr.mxu0 %v167
    %242 = vmatpush1.msra.mxu0 %v166
    %243 = vmatprep.subr.mxu0 %v165
    %244 = vmatpush1.msra.mxu0 %v164
    %245 = vmatprep.subr.mxu0 0.0
    %246 = vmatpush2.msra.mxu0 0.0
    %247 = vmatprep.subr.mxu0 0.0
    %248 = vmatpush2.msra.mxu0 0.0
    %249 = vmatprep.subr.mxu0 0.0
    %250 = vmatpush2.msra.mxu0 0.0
    %251 = vmatprep.subr.mxu0 0.0
    %252 = vmatpush2.msra.mxu0 0.0
    %253 = vmatprep.subr.mxu0 0.0
    %254 = vmatpush2.msra.mxu0 0.0
    %255 = vmatprep.subr.mxu0 0.0
    %256 = vmatpush2.msra.mxu0 0.0
    %257 = vmatprep.subr.mxu0 0.0
    %258 = vmatpush2.msra.mxu0 0.0
    %259 = vmatprep.subr.mxu0 0.0
    %260 = vmatpush2.msra.mxu0 0.0
    %261 = vmatprep.subr.mxu0 0.0
    %262 = vmatpush2.msra.mxu0 0.0
    %263 = vmatprep.subr.mxu0 0.0
    %264 = vmatpush2.msra.mxu0 0.0
    %265 = vmatprep.subr.mxu0 0.0
    %266 = vmatpush2.msra.mxu0 0.0
    %267 = vmatprep.subr.mxu0 0.0
    %268 = vmatpush2.msra.mxu0 0.0
    %269 = vmatprep.subr.mxu0 0.0
    %270 = vmatpush2.msra.mxu0 0.0
    %271 = vmatprep.subr.mxu0 0.0
    %272 = vmatpush2.msra.mxu0 0.0
    %273 = vmatprep.subr.mxu0 0.0
    %274 = vmatpush2.msra.mxu0 0.0
    %275 = vmatprep.subr.mxu0 0.0
    %276 = vmatpush2.msra.mxu0 0.0
    %277 = vmatprep.mubr.f32.mxu0 0.0
    %278 = vmatmul.mubr.f32.gmra.mxu0 %v202
    %v279 = vpop.f32.mrf.mxu0
    %v280 = vadd.f32 %v183, %v279
    %v281 = vpop.f32.mrf.mxu0
    %v282 = vadd.f32 %v183, %v281
    %283 = vmatprep.mubr.f32.mxu0 0.0
    %284 = vmatmul.mubr.f32.gmra.mxu0 %v205
    %v285 = vpop.f32.mrf.mxu0
    %v286 = vadd.f32 %v188, %v285
    %v287 = vpop.f32.mrf.mxu0
    %v288 = vadd.f32 %v188, %v287
    %289 = vmatprep.mubr.f32.mxu0 0.0
    %290 = vmatmul.mubr.f32.gmra.mxu0 %v208
    %v291 = vpop.f32.mrf.mxu0
    %v292 = vadd.f32 %v193, %v291
    %v293 = vpop.f32.mrf.mxu0
    %v294 = vadd.f32 %v193, %v293
    %295 = vmatprep.mubr.f32.mxu0 0.0
    %296 = vmatmul.mubr.f32.gmra.mxu0 %v211
    %v297 = vpop.f32.mrf.mxu0
    %v298 = vadd.f32 %v198, %v297
    %v299 = vpop.f32.mrf.mxu0
    %v300 = vadd.f32 %v198, %v299
    %301 = vdwg.mxu0
    %v302 = vtanh.pop %v280
    %v303 = vtanh.pop %v282
    %v304 = vtanh.pop %v286
    %v305 = vtanh.pop %v288
    %v306 = vtanh.pop %v292
    %v307 = vtanh.pop %v294
    %v308 = vtanh.pop %v298
    %v309 = vtanh.pop %v300
    %v310 = vld [vmem:[%s5] sm:$0xff]
    %v311 = vld [vmem:[%s5 + $0x8] sm:$0xff]
    %v312 = vld [vmem:[%s5 + $0x10] sm:$0xff]
    %v313 = vld [vmem:[%s5 + $0x18] sm:$0xff]
    %v314 = vld [vmem:[%s6] sm:$0xff]
    %v315 = vld [vmem:[%s6 + $0x8] sm:$0xff]
    %v316 = vld [vmem:[%s6 + $0x10] sm:$0xff]
    %v317 = vld [vmem:[%s6 + $0x18] sm:$0xff]
    %319 = vset.pattern.permute.xlu0 0
    %320 = vperm.xlu0 %319, %v314
    %v321 = vpop.permute.xlu0 %320
    %324 = vset.pattern.permute.xlu0 0
    %325 = vperm.xlu0 %324, %v315
    %v326 = vpop.permute.xlu0 %325
    %329 = vset.pattern.permute.xlu0 0
    %330 = vperm.xlu0 %329, %v316
    %v331 = vpop.permute.xlu0 %330
    %334 = vset.pattern.permute.xlu0 0
    %335 = vperm.xlu0 %334, %v317
    %v336 = vpop.permute.xlu0 %335
    %v339 = vsel %vm200, %v310, 0
    %v342 = vsel %vm200, %v311, 0
    %v345 = vsel %vm200, %v312, 0
    %v348 = vsel %vm200, %v313, 0
    %350 = vmatprep.subr.mxu0 0.0
    %351 = vmatpush1.msra.mxu0 0.0
    %352 = vmatprep.subr.mxu0 0.0
    %353 = vmatpush1.msra.mxu0 0.0
    %354 = vmatprep.subr.mxu0 0.0
    %355 = vmatpush1.msra.mxu0 0.0
    %356 = vmatprep.subr.mxu0 0.0
    %357 = vmatpush1.msra.mxu0 0.0
    %358 = vmatprep.subr.mxu0 0.0
    %359 = vmatpush1.msra.mxu0 0.0
    %360 = vmatprep.subr.mxu0 0.0
    %361 = vmatpush1.msra.mxu0 0.0
    %362 = vmatprep.subr.mxu0 0.0
    %363 = vmatpush1.msra.mxu0 0.0
    %364 = vmatprep.subr.mxu0 0.0
    %365 = vmatpush1.msra.mxu0 0.0
    %366 = vmatprep.subr.mxu0 0.0
    %367 = vmatpush1.msra.mxu0 0.0
    %368 = vmatprep.subr.mxu0 0.0
    %369 = vmatpush1.msra.mxu0 0.0
    %370 = vmatprep.subr.mxu0 0.0
    %371 = vmatpush1.msra.mxu0 0.0
    %372 = vmatprep.subr.mxu0 0.0
    %373 = vmatpush1.msra.mxu0 0.0
    %374 = vmatprep.subr.mxu0 %v309
    %375 = vmatpush1.msra.mxu0 %v308
    %376 = vmatprep.subr.mxu0 %v307
    %377 = vmatpush1.msra.mxu0 %v306
    %378 = vmatprep.subr.mxu0 %v305
    %379 = vmatpush1.msra.mxu0 %v304
    %380 = vmatprep.subr.mxu0 %v303
    %381 = vmatpush1.msra.mxu0 %v302
    %382 = vmatprep.subr.mxu0 0.0
    %383 = vmatpush2.msra.mxu0 0.0
    %384 = vmatprep.subr.mxu0 0.0
    %385 = vmatpush2.msra.mxu0 0.0
    %386 = vmatprep.subr.mxu0 0.0
    %387 = vmatpush2.msra.mxu0 0.0
    %388 = vmatprep.subr.mxu0 0.0
    %389 = vmatpush2.msra.mxu0 0.0
    %390 = vmatprep.subr.mxu0 0.0
    %391 = vmatpush2.msra.mxu0 0.0
    %392 = vmatprep.subr.mxu0 0.0
    %393 = vmatpush2.msra.mxu0 0.0
    %394 = vmatprep.subr.mxu0 0.0
    %395 = vmatpush2.msra.mxu0 0.0
    %396 = vmatprep.subr.mxu0 0.0
    %397 = vmatpush2.msra.mxu0 0.0
    %398 = vmatprep.subr.mxu0 0.0
    %399 = vmatpush2.msra.mxu0 0.0
    %400 = vmatprep.subr.mxu0 0.0
    %401 = vmatpush2.msra.mxu0 0.0
    %402 = vmatprep.subr.mxu0 0.0
    %403 = vmatpush2.msra.mxu0 0.0
    %404 = vmatprep.subr.mxu0 0.0
    %405 = vmatpush2.msra.mxu0 0.0
    %406 = vmatprep.subr.mxu0 0.0
    %407 = vmatpush2.msra.mxu0 0.0
    %408 = vmatprep.subr.mxu0 0.0
    %409 = vmatpush2.msra.mxu0 0.0
    %410 = vmatprep.subr.mxu0 0.0
    %411 = vmatpush2.msra.mxu0 0.0
    %412 = vmatprep.subr.mxu0 0.0
    %413 = vmatpush2.msra.mxu0 0.0
    %414 = vmatprep.mubr.f32.mxu0 0.0
    %415 = vmatmul.mubr.f32.gmra.mxu0 %v339
    %v416 = vpop.f32.mrf.mxu0
    %v417 = vadd.f32 %v321, %v416
    %v418 = vpop.f32.mrf.mxu0
    %v419 = vadd.f32 %v321, %v418
    %420 = vmatprep.mubr.f32.mxu0 0.0
    %421 = vmatmul.mubr.f32.gmra.mxu0 %v342
    %v422 = vpop.f32.mrf.mxu0
    %v423 = vadd.f32 %v326, %v422
    %v424 = vpop.f32.mrf.mxu0
    %v425 = vadd.f32 %v326, %v424
    %426 = vmatprep.mubr.f32.mxu0 0.0
    %427 = vmatmul.mubr.f32.gmra.mxu0 %v345
    %v428 = vpop.f32.mrf.mxu0
    %v429 = vadd.f32 %v331, %v428
    %v430 = vpop.f32.mrf.mxu0
    %v431 = vadd.f32 %v331, %v430
    %432 = vmatprep.mubr.f32.mxu0 0.0
    %433 = vmatmul.mubr.f32.gmra.mxu0 %v348
    %v434 = vpop.f32.mrf.mxu0
    %v435 = vadd.f32 %v336, %v434
    %v436 = vpop.f32.mrf.mxu0
    %v437 = vadd.f32 %v336, %v436
    %438 = vdwg.mxu0
    %v439 = vtanh.pop %v417
    %v440 = vtanh.pop %v419
    %v441 = vtanh.pop %v423
    %v442 = vtanh.pop %v425
    %v443 = vtanh.pop %v429
    %v444 = vtanh.pop %v431
    %v445 = vtanh.pop %v435
    %v446 = vtanh.pop %v437
    %v447 = vld [vmem:[%s7] sm:$0xff]
    %v448 = vld [vmem:[%s7 + $0x8] sm:$0xff]
    %v449 = vld [vmem:[%s7 + $0x10] sm:$0xff]
    %v450 = vld [vmem:[%s7 + $0x18] sm:$0xff]
    %452 = vset.pattern.permute.xlu0 0
    %453 = vperm.xlu0 %452, %v447
    %v454 = vpop.permute.xlu0 %453
    %457 = vset.pattern.permute.xlu0 0
    %458 = vperm.xlu0 %457, %v448
    %v459 = vpop.permute.xlu0 %458
    %462 = vset.pattern.permute.xlu0 0
    %463 = vperm.xlu0 %462, %v449
    %v464 = vpop.permute.xlu0 %463
    %467 = vset.pattern.permute.xlu0 0
    %468 = vperm.xlu0 %467, %v450
    %v469 = vpop.permute.xlu0 %468
    %v471 = vmul.f32 %v454, %v439
    %v472 = vmul.f32 %v454, %v440
    %v473 = vmul.f32 %v459, %v441
    %v474 = vmul.f32 %v459, %v442
    %v475 = vmul.f32 %v464, %v443
    %v476 = vmul.f32 %v464, %v444
    %v477 = vmul.f32 %v469, %v445
    %v478 = vmul.f32 %v469, %v446
    %v479 = vadd.f32 %v471, %v473
    %v480 = vadd.f32 %v479, %v475
    %v481 = vadd.f32 %v480, %v477
    %v482 = vrot.slane %v481, 4
    %v483 = vadd.f32 %v481, %v482
    %v484 = vrot.slane %v483, 2
    %v485 = vadd.f32 %v483, %v484
    %v486 = vrot.slane %v485, 1
    %v487 = vadd.f32 %v485, %v486
    %v488 = vadd.f32 %v472, %v474
    %v489 = vadd.f32 %v488, %v476
    %v490 = vadd.f32 %v489, %v478
    %v491 = vrot.slane %v490, 4
    %v492 = vadd.f32 %v490, %v491
    %v493 = vrot.slane %v492, 2
    %v494 = vadd.f32 %v492, %v493
    %v495 = vrot.slane %v494, 1
    %v496 = vadd.f32 %v494, %v495
    %v499 = vcombine.low %v487, %v496
    %v501 = vunpack.c.l.s4 1966171168
    %v502 = vunpack.c.0.s8 %v501
    %v503 = vlaneseq
    %v504 = vshrl.u32 %v503, 7
    %v505 = vsub.s32 %v502, %v504
    %v506 = vrot.slane %v499, %v505
    %v508 = vunpack.c.l.s4 1966171168
    %v509 = vunpack.c.0.s8 %v508
    %v510 = vlaneseq
    %v511 = vshrl.u32 %v510, 7
    %v512 = vsub.s32 %v509, %v511
    %v513 = vrot.slane %v506, %v512
    %v515 = vlaneseq
    %vm516 = vcmp.ge.s32.totalorder %v515, 0
    %vm517 = vcmp.lt.s32.totalorder %v515, 256
    %vm518 = vmand %vm516, %vm517
    %519 = vst.msk [vmem:[#allocation2] sm:$0x3] %vm518, %v513
    // Predicated region
    $region34: #{tpu_custom_call.1} parent=1 // pred_check
      _
    $region35: #{tpu_custom_call.1} parent=1 // pred_check_branch
      %521 = sbr.rel (0) target = $region37
    $region36: #{tpu_custom_call.1} parent=1 // pred_region
      %s523 = ssub.s32 32, 32
      %524 = vsyncadd [#allocation3], %s523
      %s526 = sshll.u32 [#allocation2], 4
      %s527 = int_to_ptr.vmem [resolvable:$true] %s526
      %529 = dma.vmem_to_hbm [thread:$0]  %s527, 32, %s8, [#allocation3]
    $region37: #{tpu_custom_call.1} parent=1 // pred_fallthru
      _
    // Predicated region
    $region38: #{tpu_custom_call.1} parent=1 // pred_check
      _
    $region39: #{tpu_custom_call.1} parent=1 // pred_check_branch
      %531 = sbr.rel (0) target = $region41
    $region40: #{tpu_custom_call.1} parent=1 // pred_region
      %532 = dma.done [#allocation3], 32
    $region41: #{tpu_custom_call.1} parent=1 // pred_fallthru
      _
    %533 = vsyncpa [#allocation3], 1

</llo_original>
